<compile_context>
chip_gen: v5e
topology: v5e:2x2
jax: 0.10.0
libtpu: 0.0.40
codegen_flags: <defaults>
</compile_context>

<pallas_src>
import jax
import jax.numpy as jnp
from jax.experimental import pallas as pl
from jax.experimental.pallas import tpu as pltpu


# ----------------------------- Pallas kernel -------------------------------

def _yoto_kernel(u_ref, w_ref, b_ref, o_ref):
    # u_ref: (TR, TL)  lane-dense tile of the flattened (N*C, H*W) tensor
    # w_ref: (TR, 1)   per-row scale  (row = n*C + c -> channel c)
    # b_ref: (TR, 1)   per-row bias
    o_ref[...] = (u_ref[...] * w_ref[...] + b_ref[...]).astype(o_ref.dtype)


def _largest_divisor_tile(total, base, cap):
    """Largest multiple of `base` that divides `total` and is <= cap.

    Falls back to the full extent (always legal as a block dim) when `total`
    is not a multiple of `base`.
    """
    if total % base != 0:
        return total
    best = base
    t = base
    limit = min(total, max(base, cap))
    while t <= limit:
        if total % t == 0:
            best = t
        t += base
    return best


# Keep each block <= ~2 MiB: with input + output double-buffered that is
# <= ~8 MiB of VMEM, safe under v5e's 16 MiB scoped default and v7x's budget.
_MAX_BLOCK_BYTES = 2 * 1024 * 1024


def yoto_modulate(u_nchw, weight_c, bias_c):
    """z = U * weight[:,None,None] + bias[:,None,None], U in NCHW."""
    n, c, h, w = u_nchw.shape
    rows, lanes = n * c, h * w
    dt = u_nchw.dtype

    # Lane-dense 2-D slab: sublanes = N*C rows, lanes = H*W (contiguous, free).
    u2 = u_nchw.reshape(rows, lanes)
    # Expand per-channel params to per-row columns (row r -> channel r % C).
    w_rows = jnp.tile(weight_c.astype(dt), n).reshape(rows, 1)
    b_rows = jnp.tile(bias_c.astype(dt), n).reshape(rows, 1)

    itemsize = jnp.dtype(dt).itemsize
    # Lane tile: large multiple of 128 (unmasked vst), up to 2048 lanes.
    tl = _largest_divisor_tile(lanes, 128, 2048)
    # Row tile: multiple of 8 (full sublane occupancy), capped by block bytes.
    row_cap = max(8, (_MAX_BLOCK_BYTES // (tl * itemsize)) // 8 * 8)
    tr = _largest_divisor_tile(rows, 8, row_cap)

    grid = (rows // tr, lanes // tl)

    out = pl.pallas_call(
        _yoto_kernel,
        out_shape=jax.ShapeDtypeStruct((rows, lanes), dt),
        grid_spec=pltpu.PrefetchScalarGridSpec(
            num_scalar_prefetch=0,
            grid=grid,
            in_specs=[
                pl.BlockSpec((tr, tl), lambda ri, li: (ri, li)),
                pl.BlockSpec((tr, 1), lambda ri, li: (ri, 0)),
                pl.BlockSpec((tr, 1), lambda ri, li: (ri, 0)),
            ],
            out_specs=pl.BlockSpec((tr, tl), lambda ri, li: (ri, li)),
        ),
        compiler_params=pltpu.CompilerParams(
            dimension_semantics=("parallel", "parallel")),
    )(u2, w_rows, b_rows)
    return out.reshape(n, c, h, w)


# ----------------------------- Module wrapper -------------------------------

def init_yoto_params(in_channels, key):
    """Deterministic parameter init matching the nn.Linear shapes."""
    ks = jax.random.split(key, 6)

    def linear_init(kw, kb, fan_in, fan_out):
        bound = 1.0 / jnp.sqrt(fan_in)
        w = jax.random.uniform(kw, (fan_out, fan_in), jnp.float32, -bound, bound)
        b = jax.random.uniform(kb, (fan_out,), jnp.float32, -bound, bound)
        return w, b

    w1, b1 = linear_init(ks[0], ks[1], 2, 30)               # ray_mlp Linear(2, 30)
    wc, bc = linear_init(ks[2], ks[3], 30, in_channels)     # channel Linear(30, C)
    wb, bb = linear_init(ks[4], ks[5], 30, in_channels)     # bias    Linear(30, C)
    return dict(w1=w1, b1=b1, wc=wc, bc=bc, wb=wb, bb=bb)


def yoto_block_forward(params, preference_vector, U):
    # Glue: tiny ray-MLP (2 -> 30 -> C) in plain JAX (f32 parameter math).
    v = jnp.maximum(preference_vector @ params["w1"].T + params["b1"], 0.0)  # (30,)
    weight = v @ params["wc"].T + params["bc"]                               # (C,)
    bias = v @ params["wb"].T + params["bb"]                                 # (C,)
    # Hot path: elementwise per-channel modulation in Pallas.
    return yoto_modulate(U, weight, bias)


# --------------------------------- Main -------------------------------------

if __name__ == "__main__":
    key = jax.random.PRNGKey(0)
    k_param, k_u, k_pref = jax.random.split(key, 3)

    N, C, H, W = 2, 4, 16, 16
    params = init_yoto_params(C, k_param)

    U = jax.random.normal(k_u, (N, C, H, W), jnp.float32)
    pref = jax.random.uniform(k_pref, (2,), jnp.float32)
    pref = pref / jnp.sum(pref)  # a preference ray (sums to 1), like YOTO usage

    z = yoto_block_forward(params, pref, U)
    z = jax.block_until_ready(z)

    # Reference check (pure JAX semantics identical to PyTorch forward).
    v_ref = jnp.maximum(pref @ params["w1"].T + params["b1"], 0.0)
    w_ref = (v_ref @ params["wc"].T + params["bc"]).reshape(-1, 1, 1)
    b_ref = (v_ref @ params["wb"].T + params["bb"]).reshape(-1, 1, 1)
    z_ref = U * w_ref + b_ref

    assert z.shape == (N, C, H, W)
    assert jnp.allclose(z, z_ref, atol=1e-5, rtol=1e-5), "mismatch vs reference"

    print("KERNEL_OK")
</pallas_src>

<mosaic_0001>
module attributes {stable_mosaic.version = 11 : i64} {
  func.func @_yoto_kernel(%arg0: i32, %arg1: i32, %arg2: memref<8x256xf32, #tpu.memory_space<vmem>>, %arg3: memref<8x1xf32, #tpu.memory_space<vmem>>, %arg4: memref<8x1xf32, #tpu.memory_space<vmem>>, %arg5: memref<8x256xf32, #tpu.memory_space<vmem>>) attributes {dimension_semantics = [#tpu.dimension_semantics<parallel>, #tpu.dimension_semantics<parallel>], iteration_bounds = array<i64: 1, 1>, scalar_prefetch = 0 : i64, scratch_operands = 0 : i64, tpu.core_type = #tpu.core_type<tc>, window_params = [{transform_indices = @transform_0, window_bounds = array<i64: 8, 256>}, {transform_indices = @transform_1, window_bounds = array<i64: 8, 1>}, {transform_indices = @transform_2, window_bounds = array<i64: 8, 1>}, {transform_indices = @transform_3, window_bounds = array<i64: 8, 256>}]} {
    %c0 = arith.constant 0 : index
    %c0_0 = arith.constant 0 : index
    %0 = vector.load %arg2[%c0, %c0_0] : memref<8x256xf32, #tpu.memory_space<vmem>>, vector<8x256xf32>
    %c0_1 = arith.constant 0 : index
    %c0_2 = arith.constant 0 : index
    %1 = vector.load %arg3[%c0_1, %c0_2] : memref<8x1xf32, #tpu.memory_space<vmem>>, vector<8x1xf32>
    %2 = vector.broadcast %1 : vector<8x1xf32> to vector<8x256xf32>
    %3 = arith.mulf %0, %2 : vector<8x256xf32>
    %c0_3 = arith.constant 0 : index
    %c0_4 = arith.constant 0 : index
    %4 = vector.load %arg4[%c0_3, %c0_4] : memref<8x1xf32, #tpu.memory_space<vmem>>, vector<8x1xf32>
    %5 = vector.broadcast %4 : vector<8x1xf32> to vector<8x256xf32>
    %6 = arith.addf %3, %5 : vector<8x256xf32>
    %c0_5 = arith.constant 0 : index
    %c0_6 = arith.constant 0 : index
    %7 = vector.load %arg5[%c0_5, %c0_6] : memref<8x256xf32, #tpu.memory_space<vmem>>, vector<8x256xf32>
    tpu.vector_store %arg5[%c0_5, %c0_6], %6 {strides = array<i32>} : memref<8x256xf32, #tpu.memory_space<vmem>>, vector<8x256xf32>,
    return
  }
  func.func @transform_0(%arg0: i32, %arg1: i32) -> (i32, i32) {
    %c0_i32 = arith.constant 0 : i32
    return %arg0, %arg1 : i32, i32
  }
  func.func @transform_1(%arg0: i32, %arg1: i32) -> (i32, i32) {
    %c0_i32 = arith.constant 0 : i32
    %c0_i32_0 = arith.constant 0 : i32
    return %arg0, %c0_i32 : i32, i32
  }
  func.func @transform_2(%arg0: i32, %arg1: i32) -> (i32, i32) {
    %c0_i32 = arith.constant 0 : i32
    %c0_i32_0 = arith.constant 0 : i32
    return %arg0, %c0_i32 : i32, i32
  }
  func.func @transform_3(%arg0: i32, %arg1: i32) -> (i32, i32) {
    %c0_i32 = arith.constant 0 : i32
    return %arg0, %arg1 : i32, i32
  }
}

</mosaic_0001>

<llo_original>
// kernel: tpu_custom_call.1
$region0: #{tpu_custom_call.1}
  #allocation0 [shape = 'u32[]', space=smem, size = 0x4, offset = 0x4, fixed_abs, tag = 'smem constant byte address 0x4 - core index']
  #allocation1 [shape = 'u32[72,128]{1,0:T(1,128)}', space=vmem, size = 0x9000, scoped, tag = 'internal scratch']
  %s0 = inlined_call_operand.vmem [shape: f32[8,256], index: 0, kind: input, shape index: {}]
  %s1 = inlined_call_operand.vmem [shape: f32[8,1], index: 1, kind: input, shape index: {}]
  %s2 = inlined_call_operand.vmem [shape: f32[8,1], index: 2, kind: input, shape index: {}]
  %s3 = inlined_call_operand.hbm [shape: f32[8,256], index: 3, kind: output, shape index: {}]
  %s4 = sld [smem:[#allocation0]]
  $region22: #{tpu_custom_call.1} parent=0
    _
  %s6 = ssub.s32 1, %s4
  %s7 = scalar_select 0, %s6, %s4
  $region1: #{tpu_custom_call.1} parent=0
    #allocation2 [shape = 'u8[8192]{0}', space=vmem, size = 0x2000, scoped, tag = 'output window, operand 0, single buffered']
    #allocation3 [shape = 's32[1]{0}', space=sflag, size = 0x4, scoped, tag = 'scoped memory for tpu_custom_call.1']
    %8 = vsyncpa [#allocation3], 0
    // Predicated region
    $region2: #{tpu_custom_call.1} parent=1 // pred_check
      _
    $region3: #{tpu_custom_call.1} parent=1 // pred_check_branch
      %10 = sbr.rel (0) target = $region5
    $region4: #{tpu_custom_call.1} parent=1 // pred_region
      _
    $region5: #{tpu_custom_call.1} parent=1 // pred_fallthru
      _
    // Predicated region
    $region6: #{tpu_custom_call.1} parent=1 // pred_check
      _
    $region7: #{tpu_custom_call.1} parent=1 // pred_check_branch
      %12 = sbr.rel (0) target = $region9
    $region8: #{tpu_custom_call.1} parent=1 // pred_region
      _
    $region9: #{tpu_custom_call.1} parent=1 // pred_fallthru
      _
    // Predicated region
    $region10: #{tpu_custom_call.1} parent=1 // pred_check
      _
    $region11: #{tpu_custom_call.1} parent=1 // pred_check_branch
      %14 = sbr.rel (0) target = $region13
    $region12: #{tpu_custom_call.1} parent=1 // pred_region
      _
    $region13: #{tpu_custom_call.1} parent=1 // pred_fallthru
      _
    %v15 = vld [vmem:[%s0] sm:$0xff]
    %v16 = vld [vmem:[%s0 + $0x8] sm:$0xff]
    %v17 = vld [vmem:[%s1] sm:$0xff]
    %19 = vset.pattern.permute.xlu0 0
    %20 = vperm.xlu0 %19, %v17
    %v21 = vpop.permute.xlu0 %20
    %v23 = vmul.f32 %v15, %v21
    %v24 = vmul.f32 %v16, %v21
    %v25 = vld [vmem:[%s2] sm:$0xff]
    %27 = vset.pattern.permute.xlu0 0
    %28 = vperm.xlu0 %27, %v25
    %v29 = vpop.permute.xlu0 %28
    %v31 = vadd.f32 %v23, %v29
    %v32 = vadd.f32 %v24, %v29
    %33 = vst [vmem:[#allocation2] sm:$0xff] %v31
    %34 = vst [vmem:[#allocation2 + $0x8] sm:$0xff] %v32
    // Predicated region
    $region14: #{tpu_custom_call.1} parent=1 // pred_check
      _
    $region15: #{tpu_custom_call.1} parent=1 // pred_check_branch
      %36 = sbr.rel (0) target = $region17
    $region16: #{tpu_custom_call.1} parent=1 // pred_region
      %38 = vsyncadd [#allocation3], 0
      %s40 = sshll.u32 [#allocation2], 4
      %s41 = int_to_ptr.vmem [resolvable:$true] %s40
      %s42 = sshll.u32 %s3, 4
      %s43 = int_to_ptr.hbm [resolvable:$true] %s42
      %45 = dma.vmem_to_hbm [thread:$0]  %s41, 256, %s43, [#allocation3]
    $region17: #{tpu_custom_call.1} parent=1 // pred_fallthru
      _
    // Predicated region
    $region18: #{tpu_custom_call.1} parent=1 // pred_check
      _
    $region19: #{tpu_custom_call.1} parent=1 // pred_check_branch
      %47 = sbr.rel (0) target = $region21
    $region20: #{tpu_custom_call.1} parent=1 // pred_region
      %49 = dma.done [#allocation3], 256
    $region21: #{tpu_custom_call.1} parent=1 // pred_fallthru
      _
    %50 = vsyncpa [#allocation3], 1

</llo_original>
